<compile_context>
chip_gen: v5e
topology: v5e:2x2
jax: 0.10.0
libtpu: 0.0.40
codegen_flags: <defaults>
</compile_context>

<pallas_src>
import math

import jax
import jax.numpy as jnp
import numpy as np
from jax.experimental import pallas as pl
from jax.experimental.pallas import tpu as pltpu


# ---------------------------------------------------------------------------
# Helpers
# ---------------------------------------------------------------------------
def _cdiv(a, b):
    return -(-a // b)


def _round_up(x, m):
    return _cdiv(x, m) * m


def _vmem_capacity_bytes():
    try:
        return int(pltpu.get_tpu_info().vmem_capacity_bytes)
    except Exception:
        return 64 << 20  # conservative fallback (v7x per-TensorCore VMEM)


# Generation-aware scoped-VMEM limit: ~3/4 of physical VMEM, capped at 96 MiB.
#   v5e / v6e (128 MiB) -> 96 MiB,   v7x (64 MiB) -> 48 MiB.
_VMEM_LIMIT = int(min(_vmem_capacity_bytes() * 3 // 4, 96 << 20))


def _pick_batch_tile(n, row_bytes, budget_bytes, min_steps=1):
    """Batch-tile size for a grid axis over `n` rows of `row_bytes` bytes each.

    The result is either == n (one full block) or a multiple of 8, so 2-D
    (tb, C) blocks keep dense sublane stores and satisfy the TPU tiling rule.
    Ragged last blocks (n % tb != 0) are handled by Pallas' masked partial
    blocks, so no padding of the operands is required."""
    cap = max(1, budget_bytes // max(1, row_bytes))
    if min_steps > 1:
        cap = min(cap, max(1, _cdiv(n, min_steps)))
    if cap >= n:
        return n
    tb = (cap // 8) * 8
    if tb == 0:
        tb = 8 if n > 8 else n
    return tb


# ---------------------------------------------------------------------------
# FcaNet frequency-index / DCT-filter construction (mirrors the PyTorch
# get_freq_indices / get_dct_filter / build_filter)
# ---------------------------------------------------------------------------
def get_freq_indices(method):
    assert method in ['top1', 'top2', 'top4', 'top8', 'top16', 'top32',
                      'bot1', 'bot2', 'bot4', 'bot8', 'bot16', 'bot32',
                      'low1', 'low2', 'low4', 'low8', 'low16', 'low32']
    num_freq = int(method[3:])
    if 'top' in method:
        all_x = [0, 0, 6, 0, 0, 1, 1, 4, 5, 1, 3, 0, 0, 0, 3, 2,
                 4, 6, 3, 5, 5, 2, 6, 5, 5, 3, 3, 4, 2, 2, 6, 1]
        all_y = [0, 1, 0, 5, 2, 0, 2, 0, 0, 6, 0, 4, 6, 3, 5, 2,
                 6, 3, 3, 3, 5, 1, 1, 2, 4, 2, 1, 1, 3, 0, 5, 3]
    elif 'low' in method:
        all_x = [0, 0, 1, 1, 0, 2, 2, 1, 2, 0, 3, 4, 0, 1, 3, 0,
                 1, 2, 3, 4, 5, 0, 1, 2, 3, 4, 5, 6, 1, 2, 3, 4]
        all_y = [0, 1, 0, 1, 2, 0, 1, 2, 2, 3, 0, 0, 4, 3, 1, 5,
                 4, 3, 2, 1, 0, 6, 5, 4, 3, 2, 1, 0, 6, 5, 4, 3]
    else:  # 'bot'
        all_x = [6, 1, 3, 3, 2, 4, 1, 2, 4, 4, 5, 1, 4, 6, 2, 5,
                 6, 1, 6, 2, 2, 4, 3, 3, 5, 5, 6, 2, 5, 5, 3, 6]
        all_y = [6, 4, 4, 6, 6, 3, 1, 4, 4, 5, 6, 5, 2, 2, 5, 1,
                 4, 3, 5, 0, 3, 1, 1, 2, 4, 2, 1, 1, 5, 3, 3, 3]
    return all_x[:num_freq], all_y[:num_freq]


def _build_filter(pos, freq, POS):
    result = math.cos(math.pi * freq * (pos + 0.5) / POS) / math.sqrt(POS)
    if freq == 0:
        return result
    return result * math.sqrt(2)


def get_dct_filter(tile_size_x, tile_size_y, mapper_x, mapper_y, channel):
    assert len(mapper_x) == len(mapper_y)
    assert channel % len(mapper_x) == 0
    dct_filter = np.zeros((channel, tile_size_x, tile_size_y), dtype=np.float32)
    c_part = channel // len(mapper_x)
    for i, (u_x, v_y) in enumerate(zip(mapper_x, mapper_y)):
        for t_x in range(tile_size_x):
            for t_y in range(tile_size_y):
                dct_filter[i * c_part:(i + 1) * c_part, t_x, t_y] = (
                    _build_filter(t_x, u_x, tile_size_x)
                    * _build_filter(t_y, v_y, tile_size_y))
    return jnp.asarray(dct_filter)


# ---------------------------------------------------------------------------
# Pre-pooling (only needed when input spatial != (dct_h, dct_w))
# ---------------------------------------------------------------------------
def adaptive_avg_pool2d(x, out_h, out_w):
    N, C, H, W = x.shape
    if H == out_h and W == out_w:
        return x
    # TODO(synk): general non-divisible adaptive_avg_pool2d windows (full
    # PyTorch semantics) are not implemented; only the evenly-divisible case.
    assert H % out_h == 0 and W % out_w == 0
    x = x.reshape(N, C, out_h, H // out_h, out_w, W // out_w)
    return x.mean(axis=(3, 5))


# ---------------------------------------------------------------------------
# Kernel 1 (fused): y[n,c] = sum_hw x[n,c,hw]*w[c,hw]; s = sigmoid(relu(y@W1)@W2)
# ---------------------------------------------------------------------------
def _dct_pool_fc_kernel(x_ref, w_ref, w1_ref, w2_ref, s_ref):
    # x: (TB, C, HWp)  w: (C, HWp)  w1: (C, Cr)  w2: (Cr, C)  s out: (TB, C)
    x = x_ref[...].astype(jnp.float32)
    w = w_ref[...].astype(jnp.float32)
    y = jnp.sum(x * w[None, :, :], axis=-1)                      # (TB, C)

    # Squeeze-excite FC as two MXU matmuls (no (TB, C, Cr) broadcast temps).
    h = jnp.dot(y, w1_ref[...].astype(jnp.float32),
                preferred_element_type=jnp.float32)               # (TB, Cr)
    h = jnp.maximum(h, 0.0)
    z = jnp.dot(h, w2_ref[...].astype(jnp.float32),
                preferred_element_type=jnp.float32)               # (TB, C)
    s_ref[...] = (1.0 / (1.0 + jnp.exp(-z))).astype(s_ref.dtype)


def dct_pool_fc_sigmoid(x_pooled_nchw, weight, w1, w2):
    N, C, H, W = x_pooled_nchw.shape
    assert weight.shape == (C, H, W)
    HW = H * W
    x = x_pooled_nchw.reshape(N, C, HW)
    w = weight.reshape(C, HW)

    # Lane-density fix for the classic FcaNet 7x7 case (HW = 49): zero-pad the
    # tiny pooled reduction axis to 128 lanes (zero weight keeps the sum
    # exact).  Larger HW stays untouched (full-extent block is legal).
    if HW < 128:
        pad = 128 - HW
        x = jnp.pad(x, ((0, 0), (0, 0), (0, pad)))
        w = jnp.pad(w, ((0, 0), (0, pad)))
        HW = 128

    Cr = w1.shape[1]

    # Live VMEM / step ~ 2 * x_block (dtype) + ~2 f32 temps + 2 * weight copy
    # + small FC weights + output.  Budget the f32-equivalent x block at 1/6
    # of the scoped-VMEM limit so everything (double-buffered) fits.
    budget = _VMEM_LIMIT // 6
    row_bytes_f32 = C * HW * 4
    tb = _pick_batch_tile(N, row_bytes_f32, budget,
                          min_steps=2 if N >= 16 else 1)
    grid_n = _cdiv(N, tb)

    # NOTE: the constant-index weight blocks could use pipeline_mode=
    # pl.Buffered(1) to drop their second pipeline buffer on v7x; left at the
    # default for portability since the saving is small at these sizes.
    s = pl.pallas_call(
        _dct_pool_fc_kernel,
        out_shape=jax.ShapeDtypeStruct((N, C), jnp.float32),
        grid_spec=pltpu.PrefetchScalarGridSpec(
            num_scalar_prefetch=0,
            grid=(grid_n,),
            in_specs=[
                pl.BlockSpec((tb, C, HW), lambda n: (n, 0, 0)),
                pl.BlockSpec((C, HW), lambda n: (0, 0)),   # VMEM-resident
                pl.BlockSpec((C, Cr), lambda n: (0, 0)),   # VMEM-resident
                pl.BlockSpec((Cr, C), lambda n: (0, 0)),   # VMEM-resident
            ],
            out_specs=pl.BlockSpec((tb, C), lambda n: (n, 0)),
        ),
        compiler_params=pltpu.CompilerParams(
            dimension_semantics=("parallel",),
            vmem_limit_bytes=_VMEM_LIMIT,
        ),
    )(x, w, w1, w2)
    return s


# ---------------------------------------------------------------------------
# Kernel 2: per-channel scaling   out[n, c, hw] = x[n, c, hw] * s[n, c]
# ---------------------------------------------------------------------------
def _channel_scale_kernel(x_ref, s_ref, o_ref):
    # x: (TB, C, THW)  s: (TB, C)  o: (TB, C, THW)
    s = s_ref[...].astype(x_ref.dtype)            # multiply in input dtype
    o_ref[...] = x_ref[...] * s[:, :, None]


def channel_scale(x_nchw, scale):
    N, C, H, W = x_nchw.shape
    HW = H * W
    x = x_nchw.reshape(N, C, HW)
    scale = scale.astype(jnp.float32)

    itemsize = np.dtype(x.dtype).itemsize
    row_bytes = C * HW * itemsize

    # Live VMEM / step ~ 2 * x_in + 2 * out (double-buffered) + small s:
    # budget one x block at ~1/5 of the scoped-VMEM limit.
    budget = _VMEM_LIMIT // 5

    if 8 * row_bytes > budget and HW > 128:
        # Rows too big for batch-only tiling: tile the spatial axis in
        # lane-dense multiples of 128 (last spatial block may be ragged).
        tb = 8 if N > 8 else N
        thw = max(128, (budget // max(1, tb * C * itemsize)) // 128 * 128)
        if thw >= HW:
            thw = HW
    else:
        thw = HW
        tb = _pick_batch_tile(N, row_bytes, budget,
                              min_steps=2 if N >= 16 else 1)

    # Guarantee >= 2 grid steps when the problem allows, so both v7x
    # TensorCores get work on this heaviest (HBM-bound) pass.
    if _cdiv(N, tb) * _cdiv(HW, thw) == 1:
        if N >= 16:
            tb = max(8, (_cdiv(N, 2) // 8) * 8)
        elif HW > 128:
            thw = max(128, _round_up(_cdiv(HW, 2), 128))

    grid = (_cdiv(N, tb), _cdiv(HW, thw))

    out = pl.pallas_call(
        _channel_scale_kernel,
        out_shape=jax.ShapeDtypeStruct((N, C, HW), x.dtype),
        grid_spec=pltpu.PrefetchScalarGridSpec(
            num_scalar_prefetch=0,
            grid=grid,
            in_specs=[
                pl.BlockSpec((tb, C, thw), lambda n, j: (n, 0, j)),
                pl.BlockSpec((tb, C), lambda n, j: (n, 0)),
            ],
            out_specs=pl.BlockSpec((tb, C, thw), lambda n, j: (n, 0, j)),
        ),
        compiler_params=pltpu.CompilerParams(
            dimension_semantics=("parallel", "parallel"),
            vmem_limit_bytes=_VMEM_LIMIT,
        ),
    )(x, scale)
    return out.reshape(N, C, H, W)


# ---------------------------------------------------------------------------
# The full MultiSpectralAttentionLayer
# ---------------------------------------------------------------------------
class MultiSpectralAttentionLayer:
    def __init__(self, channel, dct_h, dct_w, reduction=16,
                 freq_sel_method='top16', key=None):
        self.dct_h = dct_h
        self.dct_w = dct_w
        self.reduction = reduction
        mapper_x, mapper_y = get_freq_indices(freq_sel_method)
        self.num_split = len(mapper_x)
        mapper_x = [tx * (dct_h // 7) for tx in mapper_x]
        mapper_y = [ty * (dct_w // 7) for ty in mapper_y]
        self.weight = get_dct_filter(dct_h, dct_w, mapper_x, mapper_y, channel)

        cr = channel // reduction
        if key is None:
            key = jax.random.PRNGKey(0)
        k1, k2 = jax.random.split(key)
        b1 = 1.0 / math.sqrt(channel)
        b2 = 1.0 / math.sqrt(cr)
        # Stored pre-transposed: y @ w1 == Linear(channel, channel//reduction)(y)
        self.w1 = jax.random.uniform(k1, (channel, cr), jnp.float32, -b1, b1)
        self.w2 = jax.random.uniform(k2, (cr, channel), jnp.float32, -b2, b2)

    def __call__(self, x):
        n, c, h, w = x.shape
        x_pooled = x
        if h != self.dct_h or w != self.dct_w:
            # TODO(synk): folding the pooling into an effective (C, H, W) DCT
            # weight (and reducing over the full x with a spatial grid axis)
            # would remove this XLA pre-pass; kept separate for simplicity.
            x_pooled = adaptive_avg_pool2d(x, self.dct_h, self.dct_w)
        s = dct_pool_fc_sigmoid(x_pooled, self.weight, self.w1, self.w2)  # (n, c)
        return channel_scale(x, s)                                        # (n, c, h, w)


# ---------------------------------------------------------------------------
# Plain-JAX reference for correctness checking
# ---------------------------------------------------------------------------
def _reference_forward(x, layer):
    n, c, h, w = x.shape
    xp = x
    if h != layer.dct_h or w != layer.dct_w:
        xp = adaptive_avg_pool2d(x, layer.dct_h, layer.dct_w)
    y = jnp.sum(xp.astype(jnp.float32) * layer.weight[None].astype(jnp.float32),
                axis=(2, 3))
    hid = jnp.maximum(y @ layer.w1, 0.0)
    z = hid @ layer.w2
    s = 1.0 / (1.0 + jnp.exp(-z))
    return (x.astype(jnp.float32) * s[:, :, None, None]).astype(x.dtype)


# ---------------------------------------------------------------------------
# Example / correctness check
# ---------------------------------------------------------------------------
if __name__ == "__main__":
    # Small shapes consistent with the module: channel % num_freq == 0,
    # channel % reduction == 0.  HW = 16*16 = 256 is naturally lane-dense.
    N, C, H, W = 2, 32, 16, 16

    key = jax.random.PRNGKey(0)
    kx, kfc = jax.random.split(key)

    layer = MultiSpectralAttentionLayer(
        channel=C, dct_h=H, dct_w=W, reduction=4,
        freq_sel_method='top16', key=kfc)

    x = jax.random.normal(kx, (N, C, H, W), dtype=jnp.float32)

    out = layer(x)
    out = jax.block_until_ready(out)
    assert out.shape == (N, C, H, W)

    ref = _reference_forward(x, layer)
    # Tolerance allows for the MXU evaluating the tiny f32 FC matmuls at
    # reduced (bf16-pass) internal precision; everything else is exact f32.
    np.testing.assert_allclose(np.asarray(out), np.asarray(ref),
                               rtol=2e-2, atol=2e-3)

    print("KERNEL_OK")
</pallas_src>

<mosaic_0001>
module attributes {stable_mosaic.version = 11 : i64} {
  func.func @_dct_pool_fc_kernel(%arg0: i32, %arg1: memref<2x32x256xf32, #tpu.memory_space<vmem>>, %arg2: memref<32x256xf32, #tpu.memory_space<vmem>>, %arg3: memref<32x8xf32, #tpu.memory_space<vmem>>, %arg4: memref<8x32xf32, #tpu.memory_space<vmem>>, %arg5: memref<2x32xf32, #tpu.memory_space<vmem>>) attributes {dimension_semantics = [#tpu.dimension_semantics<parallel>], iteration_bounds = array<i64: 1>, scalar_prefetch = 0 : i64, scratch_operands = 0 : i64, tpu.core_type = #tpu.core_type<tc>, window_params = [{transform_indices = @transform_0, window_bounds = array<i64: 2, 32, 256>}, {pipeline_mode = #tpu.pipeline_mode<synchronous>, transform_indices = @transform_1, window_bounds = array<i64: 32, 256>}, {pipeline_mode = #tpu.pipeline_mode<synchronous>, transform_indices = @transform_2, window_bounds = array<i64: 32, 8>}, {pipeline_mode = #tpu.pipeline_mode<synchronous>, transform_indices = @transform_3, window_bounds = array<i64: 8, 32>}, {transform_indices = @transform_4, window_bounds = array<i64: 2, 32>}]} {
    %c0 = arith.constant 0 : index
    %c0_0 = arith.constant 0 : index
    %c0_1 = arith.constant 0 : index
    %0 = vector.load %arg1[%c0, %c0_0, %c0_1] : memref<2x32x256xf32, #tpu.memory_space<vmem>>, vector<2x32x256xf32>
    %c0_2 = arith.constant 0 : index
    %c0_3 = arith.constant 0 : index
    %1 = vector.load %arg2[%c0_2, %c0_3] : memref<32x256xf32, #tpu.memory_space<vmem>>, vector<32x256xf32>
    %2 = vector.shape_cast %1 : vector<32x256xf32> to vector<1x32x256xf32>
    %3 = vector.broadcast %2 : vector<1x32x256xf32> to vector<2x32x256xf32>
    %4 = arith.mulf %0, %3 : vector<2x32x256xf32>
    %cst = arith.constant dense<0.000000e+00> : vector<2x32xf32>
    %5 = vector.multi_reduction <add>, %4, %cst [2] : vector<2x32x256xf32> to vector<2x32xf32>
    %c0_4 = arith.constant 0 : index
    %c0_5 = arith.constant 0 : index
    %6 = vector.load %arg3[%c0_4, %c0_5] : memref<32x8xf32, #tpu.memory_space<vmem>>, vector<32x8xf32>
    %cst_6 = arith.constant dense<0.000000e+00> : vector<2x8xf32>
    %7 = tpu.matmul %5, %6, %cst_6 {dimension_numbers = #tpu.dot_dimension_numbers<[1], [0], [0], [1], [0, 0, 1, 1], [], []>} : vector<2x32xf32>, vector<32x8xf32>, vector<2x8xf32> -> vector<2x8xf32>
    %cst_7 = arith.constant 0.000000e+00 : f32
    %8 = vector.broadcast %cst_7 : f32 to vector<2x8xf32>
    %9 = arith.maximumf %7, %8 : vector<2x8xf32>
    %c0_8 = arith.constant 0 : index
    %c0_9 = arith.constant 0 : index
    %10 = vector.load %arg4[%c0_8, %c0_9] : memref<8x32xf32, #tpu.memory_space<vmem>>, vector<8x32xf32>
    %cst_10 = arith.constant dense<0.000000e+00> : vector<2x32xf32>
    %11 = tpu.matmul %9, %10, %cst_10 {dimension_numbers = #tpu.dot_dimension_numbers<[1], [0], [0], [1], [0, 0, 1, 1], [], []>} : vector<2x8xf32>, vector<8x32xf32>, vector<2x32xf32> -> vector<2x32xf32>
    %cst_11 = arith.constant 0.000000e+00 : f32
    %12 = vector.broadcast %cst_11 : f32 to vector<2x32xf32>
    %13 = arith.subf %12, %11 : vector<2x32xf32>
    %14 = math.exp %13 : vector<2x32xf32>
    %cst_12 = arith.constant 1.000000e+00 : f32
    %15 = vector.broadcast %cst_12 : f32 to vector<2x32xf32>
    %16 = arith.addf %15, %14 : vector<2x32xf32>
    %cst_13 = arith.constant 1.000000e+00 : f32
    %17 = vector.broadcast %cst_13 : f32 to vector<2x32xf32>
    %18 = arith.divf %17, %16 : vector<2x32xf32>
    %c0_14 = arith.constant 0 : index
    %c0_15 = arith.constant 0 : index
    %19 = vector.load %arg5[%c0_14, %c0_15] : memref<2x32xf32, #tpu.memory_space<vmem>>, vector<2x32xf32>
    tpu.vector_store %arg5[%c0_14, %c0_15], %18 {strides = array<i32>} : memref<2x32xf32, #tpu.memory_space<vmem>>, vector<2x32xf32>,
    return
  }
  func.func @transform_0(%arg0: i32) -> (i32, i32, i32) {
    %c0_i32 = arith.constant 0 : i32
    %c0_i32_0 = arith.constant 0 : i32
    %c0_i32_1 = arith.constant 0 : i32
    return %arg0, %c0_i32, %c0_i32_0 : i32, i32, i32
  }
  func.func @transform_1(%arg0: i32) -> (i32, i32) {
    %c0_i32 = arith.constant 0 : i32
    %c0_i32_0 = arith.constant 0 : i32
    %c0_i32_1 = arith.constant 0 : i32
    return %c0_i32, %c0_i32_0 : i32, i32
  }
  func.func @transform_2(%arg0: i32) -> (i32, i32) {
    %c0_i32 = arith.constant 0 : i32
    %c0_i32_0 = arith.constant 0 : i32
    %c0_i32_1 = arith.constant 0 : i32
    return %c0_i32, %c0_i32_0 : i32, i32
  }
  func.func @transform_3(%arg0: i32) -> (i32, i32) {
    %c0_i32 = arith.constant 0 : i32
    %c0_i32_0 = arith.constant 0 : i32
    %c0_i32_1 = arith.constant 0 : i32
    return %c0_i32, %c0_i32_0 : i32, i32
  }
  func.func @transform_4(%arg0: i32) -> (i32, i32) {
    %c0_i32 = arith.constant 0 : i32
    %c0_i32_0 = arith.constant 0 : i32
    return %arg0, %c0_i32 : i32, i32
  }
}

</mosaic_0001>

<llo_original>
// kernel: tpu_custom_call.1
$region0: #{tpu_custom_call.1}
  #allocation0 [shape = 'u32[]', space=smem, size = 0x4, offset = 0x4, fixed_abs, tag = 'smem constant byte address 0x4 - core index']
  #allocation1 [shape = 'u32[72,128]{1,0:T(1,128)}', space=vmem, size = 0x9000, scoped, tag = 'internal scratch']
  %s0 = inlined_call_operand.hbm [shape: f32[2,32,256], index: 0, kind: input, shape index: {}]
  %s1 = inlined_call_operand.hbm [shape: f32[32,256], index: 1, kind: input, shape index: {}]
  %s2 = inlined_call_operand.vmem [shape: f32[32,8], index: 2, kind: input, shape index: {}]
  %s3 = inlined_call_operand.vmem [shape: f32[8,32], index: 3, kind: input, shape index: {}]
  %s4 = inlined_call_operand.hbm [shape: f32[2,32], index: 4, kind: output, shape index: {}]
  %s5 = sld [smem:[#allocation0]]
  $region34: #{tpu_custom_call.1} parent=0
    _
  %s7 = ssub.s32 1, %s5
  %s8 = scalar_select 0, %s7, %s5
  $region1: #{tpu_custom_call.1} parent=0
    #allocation2 [shape = 'u8[65536]{0}', space=vmem, size = 0x10000, scoped, tag = 'input window, operand 0, single buffered']
    #allocation3 [shape = 's32[1]{0}', space=sflag, size = 0x4, scoped, tag = 'scoped memory for tpu_custom_call.1']
    #allocation4 [shape = 's32[1]{0}', space=sflag, size = 0x4, scoped, tag = 'scoped memory for tpu_custom_call.1']
    #allocation5 [shape = 'u8[32768]{0}', space=vmem, size = 0x8000, scoped, tag = 'input window, operand 1, single buffered']
    #allocation6 [shape = 's32[1]{0}', space=sflag, size = 0x4, scoped, tag = 'scoped memory for tpu_custom_call.1']
    #allocation7 [shape = 'u8[1024]{0}', space=vmem, size = 0x400, scoped, tag = 'output window, operand 0, single buffered']
    %9 = vsyncpa [#allocation3], 0
    %10 = vsyncpa [#allocation6], 0
    %11 = vsyncpa [#allocation4], 0
    // Predicated region
    $region2: #{tpu_custom_call.1} parent=1 // pred_check
      _
    $region3: #{tpu_custom_call.1} parent=1 // pred_check_branch
      %13 = sbr.rel (0) target = $region5
    $region4: #{tpu_custom_call.1} parent=1 // pred_region
      %15 = vsyncadd [#allocation3], 0
      %s16 = sshll.u32 %s0, 4
      %s17 = int_to_ptr.hbm [resolvable:$true] %s16
      %s18 = sshll.u32 [#allocation2], 4
      %s19 = int_to_ptr.vmem [resolvable:$true] %s18
      %24 = dma.hbm_to_vmem [thread:$0]  %s17, 2048, %s19, [#allocation3], 256, 256, 16
    $region5: #{tpu_custom_call.1} parent=1 // pred_fallthru
      _
    // Predicated region
    $region6: #{tpu_custom_call.1} parent=1 // pred_check
      _
    $region7: #{tpu_custom_call.1} parent=1 // pred_check_branch
      %26 = sbr.rel (0) target = $region9
    $region8: #{tpu_custom_call.1} parent=1 // pred_region
      %28 = vsyncadd [#allocation6], 0
      %s29 = sshll.u32 %s1, 4
      %s30 = int_to_ptr.hbm [resolvable:$true] %s29
      %s31 = sshll.u32 [#allocation5], 4
      %s32 = int_to_ptr.vmem [resolvable:$true] %s31
      %37 = dma.hbm_to_vmem [thread:$0]  %s30, 1024, %s32, [#allocation6], 256, 256, 16
    $region9: #{tpu_custom_call.1} parent=1 // pred_fallthru
      _
    // Predicated region
    $region10: #{tpu_custom_call.1} parent=1 // pred_check
      _
    $region11: #{tpu_custom_call.1} parent=1 // pred_check_branch
      %39 = sbr.rel (0) target = $region13
    $region12: #{tpu_custom_call.1} parent=1 // pred_region
      _
    $region13: #{tpu_custom_call.1} parent=1 // pred_fallthru
      _
    // Predicated region
    $region14: #{tpu_custom_call.1} parent=1 // pred_check
      _
    $region15: #{tpu_custom_call.1} parent=1 // pred_check_branch
      %41 = sbr.rel (0) target = $region17
    $region16: #{tpu_custom_call.1} parent=1 // pred_region
      _
    $region17: #{tpu_custom_call.1} parent=1 // pred_fallthru
      _
    // Predicated region
    $region18: #{tpu_custom_call.1} parent=1 // pred_check
      _
    $region19: #{tpu_custom_call.1} parent=1 // pred_check_branch
      %43 = sbr.rel (0) target = $region21
    $region20: #{tpu_custom_call.1} parent=1 // pred_region
      %45 = dma.done [#allocation3], 2048
    $region21: #{tpu_custom_call.1} parent=1 // pred_fallthru
      _
    // Predicated region
    $region22: #{tpu_custom_call.1} parent=1 // pred_check
      _
    $region23: #{tpu_custom_call.1} parent=1 // pred_check_branch
      %47 = sbr.rel (0) target = $region25
    $region24: #{tpu_custom_call.1} parent=1 // pred_region
      %49 = dma.done [#allocation6], 1024
    $region25: #{tpu_custom_call.1} parent=1 // pred_fallthru
      _
    %v50 = vld [vmem:[#allocation2] sm:$0xff]
    %v51 = vld [vmem:[#allocation2 + $0x8] sm:$0xff]
    %v52 = vld [vmem:[#allocation2 + $0x10] sm:$0xff]
    %v53 = vld [vmem:[#allocation2 + $0x18] sm:$0xff]
    %v54 = vld [vmem:[#allocation2 + $0x20] sm:$0xff]
    %v55 = vld [vmem:[#allocation2 + $0x28] sm:$0xff]
    %v56 = vld [vmem:[#allocation2 + $0x30] sm:$0xff]
    %v57 = vld [vmem:[#allocation2 + $0x38] sm:$0xff]
    %v58 = vld [vmem:[#allocation2 + $0x40] sm:$0xff]
    %v59 = vld [vmem:[#allocation2 + $0x48] sm:$0xff]
    %v60 = vld [vmem:[#allocation2 + $0x50] sm:$0xff]
    %v61 = vld [vmem:[#allocation2 + $0x58] sm:$0xff]
    %v62 = vld [vmem:[#allocation2 + $0x60] sm:$0xff]
    %v63 = vld [vmem:[#allocation2 + $0x68] sm:$0xff]
    %v64 = vld [vmem:[#allocation2 + $0x70] sm:$0xff]
    %v65 = vld [vmem:[#allocation2 + $0x78] sm:$0xff]
    %v66 = vld [vmem:[#allocation5] sm:$0xff]
    %v67 = vld [vmem:[#allocation5 + $0x8] sm:$0xff]
    %v68 = vld [vmem:[#allocation5 + $0x10] sm:$0xff]
    %v69 = vld [vmem:[#allocation5 + $0x18] sm:$0xff]
    %v70 = vld [vmem:[#allocation5 + $0x20] sm:$0xff]
    %v71 = vld [vmem:[#allocation5 + $0x28] sm:$0xff]
    %v72 = vld [vmem:[#allocation5 + $0x30] sm:$0xff]
    %v73 = vld [vmem:[#allocation5 + $0x38] sm:$0xff]
    %v74 = vmul.f32 %v50, %v66
    %v75 = vmul.f32 %v51, %v67
    %v76 = vmul.f32 %v52, %v68
    %v77 = vmul.f32 %v53, %v69
    %v78 = vmul.f32 %v54, %v70
    %v79 = vmul.f32 %v55, %v71
    %v80 = vmul.f32 %v56, %v72
    %v81 = vmul.f32 %v57, %v73
    %v82 = vmul.f32 %v58, %v66
    %v83 = vmul.f32 %v59, %v67
    %v84 = vmul.f32 %v60, %v68
    %v85 = vmul.f32 %v61, %v69
    %v86 = vmul.f32 %v62, %v70
    %v87 = vmul.f32 %v63, %v71
    %v88 = vmul.f32 %v64, %v72
    %v89 = vmul.f32 %v65, %v73
    %v90 = vadd.f32 %v74, %v75
    %91 = vadd.xlane.f32.xlu0 %v90
    %v92 = vpop.xlane.xlu0 %91
    %v93 = vadd.f32 %v76, %v77
    %94 = vadd.xlane.f32.xlu0 %v93
    %v95 = vpop.xlane.xlu0 %94
    %v96 = vadd.f32 %v78, %v79
    %97 = vadd.xlane.f32.xlu0 %v96
    %v98 = vpop.xlane.xlu0 %97
    %v99 = vadd.f32 %v80, %v81
    %100 = vadd.xlane.f32.xlu0 %v99
    %v101 = vpop.xlane.xlu0 %100
    %v102 = vadd.f32 %v82, %v83
    %103 = vadd.xlane.f32.xlu0 %v102
    %v104 = vpop.xlane.xlu0 %103
    %v105 = vadd.f32 %v84, %v85
    %106 = vadd.xlane.f32.xlu0 %v105
    %v107 = vpop.xlane.xlu0 %106
    %v108 = vadd.f32 %v86, %v87
    %109 = vadd.xlane.f32.xlu0 %v108
    %v110 = vpop.xlane.xlu0 %109
    %v111 = vadd.f32 %v88, %v89
    %112 = vadd.xlane.f32.xlu0 %v111
    %v113 = vpop.xlane.xlu0 %112
    %v114 = vld [vmem:[%s2] sm:$0xff]
    %v115 = vld [vmem:[%s2 + $0x8] sm:$0xff]
    %v116 = vld [vmem:[%s2 + $0x10] sm:$0xff]
    %v117 = vld [vmem:[%s2 + $0x18] sm:$0xff]
    %v126 = vlaneseq
    %v127 = vand.u32 %v126, 127
    %v128 = vperm.slane %v92, %v127
    %v129 = vadd.s32 %v127, 4294967288
    %v130 = vperm.slane %v95, %v129
    %vm131 = vcmask 130112
    %v132 = vsel %vm131, %v130, %v128
    %v133 = vadd.s32 %v127, 4294967280
    %v134 = vperm.slane %v98, %v133
    %vm135 = vcmask 195712
    %v136 = vsel %vm135, %v134, %v132
    %v137 = vadd.s32 %v127, 4294967272
    %v138 = vperm.slane %v101, %v137
    %vm139 = vcmask 261312
    %v140 = vsel %vm139, %v138, %v136
    %v141 = vperm.slane %v104, %v127
    %v142 = vperm.slane %v107, %v129
    %v143 = vsel %vm131, %v142, %v141
    %v144 = vperm.slane %v110, %v133
    %v145 = vsel %vm135, %v144, %v143
    %v146 = vperm.slane %v113, %v137
    %v147 = vsel %vm139, %v146, %v145
    %vm148 = vcmask 1041409
    %v149 = vsel %vm148, %v147, %v140
    %vm150 = vcmask 261120
    %v151 = vsel %vm150, %v149, 0
    %153 = vmatpush.msra.mxu0 0.0
    %154 = vmatpush.msra.mxu0 0.0
    %155 = vmatpush.msra.mxu0 0.0
    %156 = vmatpush.msra.mxu0 0.0
    %157 = vmatpush.msra.mxu0 0.0
    %158 = vmatpush.msra.mxu0 0.0
    %159 = vmatpush.msra.mxu0 0.0
    %160 = vmatpush.msra.mxu0 0.0
    %161 = vmatpush.msra.mxu0 0.0
    %162 = vmatpush.msra.mxu0 0.0
    %163 = vmatpush.msra.mxu0 0.0
    %164 = vmatpush.msra.mxu0 0.0
    %165 = vmatpush.msra.mxu0 %v117
    %166 = vmatpush.msra.mxu0 %v116
    %167 = vmatpush.msra.mxu0 %v115
    %168 = vmatpush.msra.mxu0 %v114
    %169 = vmatmul.f32.gmra.mxu0 %v151
    %v170 = vpop.f32.mrf.mxu0
    %v171 = vadd.f32 0.0, %v170
    %172 = vdwg.mxu0
    %v173 = vmax.f32 %v171, 0.0
    %v174 = vld [vmem:[%s3] sm:$0xff]
    %vm175 = vcmask 64512
    %v177 = vsel %vm175, %v173, 0
    %179 = vmatpush.msra.mxu0 0.0
    %180 = vmatpush.msra.mxu0 0.0
    %181 = vmatpush.msra.mxu0 0.0
    %182 = vmatpush.msra.mxu0 0.0
    %183 = vmatpush.msra.mxu0 0.0
    %184 = vmatpush.msra.mxu0 0.0
    %185 = vmatpush.msra.mxu0 0.0
    %186 = vmatpush.msra.mxu0 0.0
    %187 = vmatpush.msra.mxu0 0.0
    %188 = vmatpush.msra.mxu0 0.0
    %189 = vmatpush.msra.mxu0 0.0
    %190 = vmatpush.msra.mxu0 0.0
    %191 = vmatpush.msra.mxu0 0.0
    %192 = vmatpush.msra.mxu0 0.0
    %193 = vmatpush.msra.mxu0 0.0
    %194 = vmatpush.msra.mxu0 %v174
    %195 = vmatmul.f32.gmra.mxu0 %v177
    %v196 = vpop.f32.mrf.mxu0
    %v197 = vadd.f32 0.0, %v196
    %198 = vdwg.mxu0
    %v199 = vsub.f32 0.0, %v197
    %v200 = vmul.f32 %v199, 1.442695
    %v201 = vpow.pop %v200
    %v202 = vadd.f32 %v201, 1.0
    %v203 = vrcp.pop %v202
    %v204 = vmul.f32 %v202, %v203
    %v205 = vsub.f32 1.0, %v204
    %v206 = vmul.f32 %v203, %v205
    %v207 = vadd.f32 %v203, %v206
    %vm208 = vweird.f32 %v202
    %vm209 = vweird.f32 %v203
    %vm210 = vmor %vm208, %vm209
    %v211 = vsel %vm210, %v203, %v207
    %v212 = vand.u32 2147483647, %v202
    %vm213 = vcmp.eq.f32.partialorder %v212, 8.507059e+37
    %v214 = vand.u32 %v202, 2147483648
    %v215 = vor.u32 1.1754944e-38, %v214
    %v216 = vsel %vm213, %v215, %v211
    %v217 = vmul.f32 1.0, %v216
    %vm218 = vcmask 254976
    %219 = vst.msk [vmem:[#allocation7] sm:$0x3] %vm218, %v217
    // Predicated region
    $region26: #{tpu_custom_call.1} parent=1 // pred_check
      _
    $region27: #{tpu_custom_call.1} parent=1 // pred_check_branch
      %221 = sbr.rel (0) target = $region29
    $region28: #{tpu_custom_call.1} parent=1 // pred_region
      %223 = vsyncadd [#allocation4], 0
      %s225 = sshll.u32 [#allocation7], 4
      %s226 = int_to_ptr.vmem [resolvable:$true] %s225
      %s227 = sshll.u32 %s4, 4
      %s228 = int_to_ptr.hbm [resolvable:$true] %s227
      %230 = dma.vmem_to_hbm [thread:$0]  %s226, 32, %s228, [#allocation4]
    $region29: #{tpu_custom_call.1} parent=1 // pred_fallthru
      _
    // Predicated region
    $region30: #{tpu_custom_call.1} parent=1 // pred_check
      _
    $region31: #{tpu_custom_call.1} parent=1 // pred_check_branch
      %232 = sbr.rel (0) target = $region33
    $region32: #{tpu_custom_call.1} parent=1 // pred_region
      %234 = dma.done [#allocation4], 32
    $region33: #{tpu_custom_call.1} parent=1 // pred_fallthru
      _
    %235 = vsyncpa [#allocation3], 1
    %236 = vsyncpa [#allocation6], 1
    %237 = vsyncpa [#allocation4], 1

</llo_original>
